<compile_context>
chip_gen: v7x
topology: tpu7x:2x2x1
jax: 0.10.0
libtpu: 0.0.40
codegen_flags: <defaults>
</compile_context>

<pallas_src>
import functools

import jax
import jax.numpy as jnp
from jax.experimental import pallas as pl
from jax.experimental.pallas import tpu as pltpu

KSIZE = 5   # conv kernel size
PAD = 2     # "same" padding for 5x5 stride-1 conv


def _round_up(x, m):
    return (x + m - 1) // m * m


# =============================================================================
# NormPooling2d — the spec module:  coef * sqrt(AvgPool2d(k)(x * x)),
# coef = sqrt(prod(k)).  With stride == kernel_size this is exactly
# sqrt(sum of x^2 over each window).
# =============================================================================
def _make_norm_pool_kernel(kk):
    def kernel(x_ref, o_ref):
        # x_ref: (kk, g_blk, C) window-position-major squares source
        # o_ref: (g_blk, C)
        acc = jnp.zeros(o_ref.shape, jnp.float32)
        for i in range(kk):                      # static unroll, VPU adds only
            v = x_ref[i]
            acc = acc + v * v
        o_ref[...] = jnp.sqrt(acc)
    return kernel


def norm_pooling_2d(x_nchw, kernel_size=(2, 2)):
    """Pallas NormPooling2d forward (NCHW in / NCHW out), stride == kernel."""
    kh, kw = kernel_size
    B, C, H, W = x_nchw.shape
    assert H % kh == 0 and W % kw == 0
    Ho, Wo = H // kh, W // kw
    KK = kh * kw
    G = B * Ho * Wo

    # NHWC, then put the window elements on a leading axis so the kernel only
    # does major-axis adds (no in-kernel reshapes / strided slices).
    x = jnp.transpose(x_nchw, (0, 2, 3, 1))                       # (B,H,W,C)
    x = x.reshape(B, Ho, kh, Wo, kw, C)
    x = jnp.transpose(x, (2, 4, 0, 1, 3, 5)).reshape(KK, G, C)

    g_blk = min(_round_up(G, 8), 1024)
    Gp = _round_up(G, g_blk)
    x = jnp.pad(x, ((0, 0), (0, Gp - G), (0, 0))).astype(jnp.float32)

    out = pl.pallas_call(
        _make_norm_pool_kernel(KK),
        out_shape=jax.ShapeDtypeStruct((Gp, C), jnp.float32),
        grid=(Gp // g_blk,),
        in_specs=[pl.BlockSpec((KK, g_blk, C), lambda i: (0, i, 0))],
        out_specs=pl.BlockSpec((g_blk, C), lambda i: (i, 0)),
        compiler_params=pltpu.CompilerParams(
            dimension_semantics=("parallel",)),
    )(x)

    out = out[:G].reshape(B, Ho, Wo, C)
    return jnp.transpose(out, (0, 3, 1, 2))                       # back to NCHW


def _norm_pooling_2d_reference(x_nchw, kernel_size):
    """Pure-jnp reference matching the PyTorch module literally."""
    kh, kw = kernel_size
    B, C, H, W = x_nchw.shape
    xr = x_nchw.reshape(B, C, H // kh, kh, W // kw, kw)
    avg = jnp.mean(xr * xr, axis=(3, 5))
    return jnp.sqrt(float(kh * kw)) * jnp.sqrt(avg)


# =============================================================================
# Fused conv block: Conv2d(5x5,s1,p2) + bias + CRelu (folded into weights)
#                   + NormPooling2d((2,2), stride 2)
# =============================================================================
def _conv_block_kernel(p_ref, w_ref, b_ref, o_ref):
    # p_ref: (4, g_blk, Kpad) bf16 — im2col patches, grouped by 2x2 pooling
    #        window position; rows ordered (b, ho, wo).
    # w_ref: (Kpad, Npad) bf16 — CRelu-folded, zero-padded conv weights.
    # b_ref: (1, Npad) f32
    # o_ref: (g_blk, Npad) f32 — NormPooling2d output rows.
    w = w_ref[...]
    b = b_ref[...]
    acc = jnp.zeros(o_ref.shape, jnp.float32)
    for i in range(4):                            # 2x2 window positions
        y = jnp.dot(p_ref[i], w, preferred_element_type=jnp.float32) + b
        y = jnp.maximum(y, 0.0)                   # CRelu (folded) in f32
        acc = acc + y * y
    o_ref[...] = jnp.sqrt(acc)                    # sqrt(sum of squares) = pool


def _im2col_window_major(x_nhwc):
    """(4, B*Ho*Wo, 25*C) patches grouped by 2x2 pooling-window position.

    Group g = dh*2 + dw holds the 5x5 patch of conv-output pixel
    (2*ho + dh, 2*wo + dw); rows ordered (b, ho, wo).  K-axis order is
    (kh, kw, c), matching the prepped weight layout.
    """
    B, H, W, C = x_nhwc.shape
    Ho, Wo = H // 2, W // 2
    xp = jnp.pad(x_nhwc, ((0, 0), (PAD, PAD), (PAD, PAD), (0, 0)))
    cols = jnp.concatenate(
        [xp[:, kh:kh + H, kw:kw + W, :]
         for kh in range(KSIZE) for kw in range(KSIZE)], axis=-1)   # (B,H,W,25C)
    groups = [cols[:, dh::2, dw::2, :].reshape(B * Ho * Wo, KSIZE * KSIZE * C)
              for dh in range(2) for dw in range(2)]
    return jnp.stack(groups, axis=0)


def _conv_operands(x_nhwc, w):
    B, H, W, _ = x_nhwc.shape
    Ho, Wo = H // 2, W // 2
    G = B * Ho * Wo
    kpad = w.shape[0]
    patches = _im2col_window_major(x_nhwc)
    g_blk = min(_round_up(G, 8), 512)
    Gp = _round_up(G, g_blk)
    patches = jnp.pad(patches,
                      ((0, 0), (0, Gp - G), (0, kpad - patches.shape[-1])))
    return patches.astype(jnp.bfloat16), G, Gp, g_blk, Ho, Wo


def conv_crelu_normpool(x_nhwc, w, b, nout):
    B = x_nhwc.shape[0]
    patches, G, Gp, g_blk, Ho, Wo = _conv_operands(x_nhwc, w)
    kpad, npad = w.shape
    out = pl.pallas_call(
        _conv_block_kernel,
        out_shape=jax.ShapeDtypeStruct((Gp, npad), jnp.float32),
        grid=(Gp // g_blk,),
        in_specs=[
            pl.BlockSpec((4, g_blk, kpad), lambda i: (0, i, 0)),
            pl.BlockSpec((kpad, npad), lambda i: (0, 0)),     # weights resident
            pl.BlockSpec((1, npad), lambda i: (0, 0)),
        ],
        out_specs=pl.BlockSpec((g_blk, npad), lambda i: (i, 0)),
        compiler_params=pltpu.CompilerParams(
            dimension_semantics=("parallel",)),
    )(patches, w, b)
    return out[:G, :nout].reshape(B, Ho, Wo, nout)


def _conv_crelu_normpool_jnp(x_nhwc, w, b, nout):
    """Same math in pure jnp (reference for the Pallas kernel)."""
    B = x_nhwc.shape[0]
    patches, G, _, _, Ho, Wo = _conv_operands(x_nhwc, w)
    acc = jnp.zeros((patches.shape[1], w.shape[1]), jnp.float32)
    for i in range(4):
        y = jnp.dot(patches[i], w, preferred_element_type=jnp.float32) + b
        y = jnp.maximum(y, 0.0)
        acc = acc + y * y
    return jnp.sqrt(acc)[:G, :nout].reshape(B, Ho, Wo, nout)


# =============================================================================
# FC head: fc1 + bias -> CRelu (split, no concat) -> fc2 + bias
# =============================================================================
def _fc_head_kernel(x_ref, w1_ref, b1_ref, w2p_ref, w2n_ref, b2_ref, o_ref):
    h = jnp.dot(x_ref[...], w1_ref[...],
                preferred_element_type=jnp.float32) + b1_ref[...]
    hp = jnp.maximum(h, 0.0).astype(jnp.bfloat16)
    hn = jnp.maximum(-h, 0.0).astype(jnp.bfloat16)
    acc = jnp.dot(hp, w2p_ref[...], preferred_element_type=jnp.float32)
    acc = acc + jnp.dot(hn, w2n_ref[...], preferred_element_type=jnp.float32)
    o_ref[...] = acc + b2_ref[...]


def fc_head(x, params, num_classes):
    B = x.shape[0]
    npad = params["fc2_b"].shape[1]
    out = pl.pallas_call(
        _fc_head_kernel,
        out_shape=jax.ShapeDtypeStruct((B, npad), jnp.float32),
    )(x.astype(jnp.bfloat16), params["fc1_w"], params["fc1_b"],
      params["fc2_wp"], params["fc2_wn"], params["fc2_b"])
    return out[:, :num_classes]


def _fc_head_jnp(x, params, num_classes):
    h = jnp.dot(x.astype(jnp.bfloat16), params["fc1_w"],
                preferred_element_type=jnp.float32) + params["fc1_b"]
    hp = jnp.maximum(h, 0.0).astype(jnp.bfloat16)
    hn = jnp.maximum(-h, 0.0).astype(jnp.bfloat16)
    out = (jnp.dot(hp, params["fc2_wp"], preferred_element_type=jnp.float32)
           + jnp.dot(hn, params["fc2_wn"], preferred_element_type=jnp.float32)
           + params["fc2_b"])
    return out[:, :num_classes]


# =============================================================================
# Full forward + parameter prep
# =============================================================================
def prep_params(raw, num_classes):
    """One-time conversion of PyTorch-layout params into kernel-ready arrays:
    CRelu folded into conv / fc2 weights, im2col weight layout, K and N padded
    to multiples of 128 (lane-dense outputs), bf16 matmul operands."""
    p = {}
    cfg = {"num_classes": num_classes}
    for name in ("conv1", "conv2"):
        w_oihw, bias = raw[name + "_w"], raw[name + "_b"]
        cout, cin, kh, kw = w_oihw.shape
        w = jnp.transpose(w_oihw, (2, 3, 1, 0)).reshape(kh * kw * cin, cout)
        w = jnp.concatenate([w, -w], axis=1)                 # fold CRelu
        b = jnp.concatenate([bias, -bias], axis=0)
        kpad = _round_up(w.shape[0], 128)
        npad = _round_up(w.shape[1], 128)
        w = jnp.pad(w, ((0, kpad - w.shape[0]), (0, npad - w.shape[1])))
        b = jnp.pad(b, (0, npad - b.shape[0]))
        p[name + "_w"] = w.astype(jnp.bfloat16)
        p[name + "_b"] = b.reshape(1, npad).astype(jnp.float32)
        cfg[name + "_nout"] = 2 * cout
    h1 = raw["fc1_w"].shape[0]
    ncpad = _round_up(num_classes, 128)
    w2 = jnp.pad(raw["fc2_w"].T, ((0, 0), (0, ncpad - num_classes)))
    p["fc1_w"] = raw["fc1_w"].T.astype(jnp.bfloat16)         # (num_dense, 1024)
    p["fc1_b"] = raw["fc1_b"].reshape(1, h1).astype(jnp.float32)
    p["fc2_wp"] = w2[:h1].astype(jnp.bfloat16)               # relu(h)  half
    p["fc2_wn"] = w2[h1:].astype(jnp.bfloat16)               # relu(-h) half
    p["fc2_b"] = jnp.pad(raw["fc2_b"], (0, ncpad - num_classes)) \
                    .reshape(1, ncpad).astype(jnp.float32)
    return p, cfg


def l2_nonexpa_convnet_forward(x_nchw, params, cfg):
    B = x_nchw.shape[0]
    x = jnp.transpose(x_nchw, (0, 2, 3, 1))                  # NCHW -> NHWC
    y = conv_crelu_normpool(x, params["conv1_w"], params["conv1_b"],
                            cfg["conv1_nout"])               # (B, H/2, W/2, 64)
    y = conv_crelu_normpool(y, params["conv2_w"], params["conv2_b"],
                            cfg["conv2_nout"])               # (B, H/4, W/4, 128)
    # Match PyTorch `x.view(-1, num_dense)` on an NCHW tensor: flatten (C,H,W).
    flat = jnp.transpose(y, (0, 3, 1, 2)).reshape(B, -1)
    return fc_head(flat, params, cfg["num_classes"])


def _forward_reference(x_nchw, params, cfg):
    B = x_nchw.shape[0]
    x = jnp.transpose(x_nchw, (0, 2, 3, 1))
    y = _conv_crelu_normpool_jnp(x, params["conv1_w"], params["conv1_b"],
                                 cfg["conv1_nout"])
    y = _conv_crelu_normpool_jnp(y, params["conv2_w"], params["conv2_b"],
                                 cfg["conv2_nout"])
    flat = jnp.transpose(y, (0, 3, 1, 2)).reshape(B, -1)
    return _fc_head_jnp(flat, params, cfg["num_classes"])


def init_params(key, in_channels, im_size, num_classes):
    num_dense = (im_size // 4) ** 2 * 64 * 2                 # module's num_dense
    ks = jax.random.split(key, 8)

    def rnd(k, shape, scale):
        return (scale * jax.random.normal(k, shape)).astype(jnp.float32)

    return {
        "conv1_w": rnd(ks[0], (32, in_channels, 5, 5), 0.05),
        "conv1_b": rnd(ks[1], (32,), 0.05),
        "conv2_w": rnd(ks[2], (64, 64, 5, 5), 0.05),
        "conv2_b": rnd(ks[3], (64,), 0.05),
        "fc1_w":   rnd(ks[4], (1024, num_dense), 0.02),
        "fc1_b":   rnd(ks[5], (1024,), 0.02),
        "fc2_w":   rnd(ks[6], (num_classes, 1024 * 2), 0.02),
        "fc2_b":   rnd(ks[7], (num_classes,), 0.02),
    }


if __name__ == "__main__":
    B, in_channels, im_size, num_classes = 2, 4, 16, 10
    key = jax.random.PRNGKey(0)
    kx, kp = jax.random.split(key)
    x = jax.random.normal(kx, (B, in_channels, im_size, im_size), jnp.float32)

    # 1) NormPooling2d (the spec module) standalone kernel vs jnp reference.
    pooled = jax.block_until_ready(jax.jit(norm_pooling_2d)(x))
    pooled_ref = _norm_pooling_2d_reference(x, (2, 2))
    assert pooled.shape == (B, in_channels, im_size // 2, im_size // 2)
    assert bool(jnp.allclose(pooled, pooled_ref, rtol=1e-4, atol=1e-5))

    # 2) Full L2NonExpaConvNet forward with the fused, optimized kernels.
    raw = init_params(kp, in_channels, im_size, num_classes)
    params, cfg = prep_params(raw, num_classes)
    fwd = jax.jit(functools.partial(l2_nonexpa_convnet_forward, cfg=cfg))
    out = jax.block_until_ready(fwd(x, params))
    ref = _forward_reference(x, params, cfg)
    assert out.shape == (B, num_classes) and out.dtype == jnp.float32
    assert bool(jnp.isfinite(out).all())
    assert bool(jnp.allclose(out, ref, rtol=1e-2, atol=1e-2))

    print("KERNEL_OK")
</pallas_src>

<mosaic_0001>
module attributes {stable_mosaic.version = 11 : i64} {
  func.func @kernel(%arg0: i32, %arg1: memref<4x128x4xf32, #tpu.memory_space<vmem>>, %arg2: memref<128x4xf32, #tpu.memory_space<vmem>>) attributes {dimension_semantics = [#tpu.dimension_semantics<parallel>], iteration_bounds = array<i64: 1>, scalar_prefetch = 0 : i64, scratch_operands = 0 : i64, tpu.core_type = #tpu.core_type<tc>, window_params = [{transform_indices = @transform_0, window_bounds = array<i64: 4, 128, 4>}, {transform_indices = @transform_1, window_bounds = array<i64: 128, 4>}]} {
    %cst = arith.constant 0.000000e+00 : f32
    %0 = vector.broadcast %cst : f32 to vector<128x4xf32>
    %c0 = arith.constant 0 : index
    %c0_0 = arith.constant 0 : index
    %c0_1 = arith.constant 0 : index
    %1 = vector.load %arg1[%c0, %c0_0, %c0_1] : memref<4x128x4xf32, #tpu.memory_space<vmem>>, vector<1x128x4xf32>
    %2 = vector.shape_cast %1 : vector<1x128x4xf32> to vector<128x4xf32>
    %3 = arith.mulf %2, %2 : vector<128x4xf32>
    %4 = arith.addf %0, %3 : vector<128x4xf32>
    %c1 = arith.constant 1 : index
    %c0_2 = arith.constant 0 : index
    %c0_3 = arith.constant 0 : index
    %5 = vector.load %arg1[%c1, %c0_2, %c0_3] : memref<4x128x4xf32, #tpu.memory_space<vmem>>, vector<1x128x4xf32>
    %6 = vector.shape_cast %5 : vector<1x128x4xf32> to vector<128x4xf32>
    %7 = arith.mulf %6, %6 : vector<128x4xf32>
    %8 = arith.addf %4, %7 : vector<128x4xf32>
    %c2 = arith.constant 2 : index
    %c0_4 = arith.constant 0 : index
    %c0_5 = arith.constant 0 : index
    %9 = vector.load %arg1[%c2, %c0_4, %c0_5] : memref<4x128x4xf32, #tpu.memory_space<vmem>>, vector<1x128x4xf32>
    %10 = vector.shape_cast %9 : vector<1x128x4xf32> to vector<128x4xf32>
    %11 = arith.mulf %10, %10 : vector<128x4xf32>
    %12 = arith.addf %8, %11 : vector<128x4xf32>
    %c3 = arith.constant 3 : index
    %c0_6 = arith.constant 0 : index
    %c0_7 = arith.constant 0 : index
    %13 = vector.load %arg1[%c3, %c0_6, %c0_7] : memref<4x128x4xf32, #tpu.memory_space<vmem>>, vector<1x128x4xf32>
    %14 = vector.shape_cast %13 : vector<1x128x4xf32> to vector<128x4xf32>
    %15 = arith.mulf %14, %14 : vector<128x4xf32>
    %16 = arith.addf %12, %15 : vector<128x4xf32>
    %17 = math.sqrt %16 : vector<128x4xf32>
    %c0_8 = arith.constant 0 : index
    %c0_9 = arith.constant 0 : index
    %18 = vector.load %arg2[%c0_8, %c0_9] : memref<128x4xf32, #tpu.memory_space<vmem>>, vector<128x4xf32>
    tpu.vector_store %arg2[%c0_8, %c0_9], %17 {strides = array<i32>} : memref<128x4xf32, #tpu.memory_space<vmem>>, vector<128x4xf32>,
    return
  }
  func.func @transform_0(%arg0: i32) -> (i32, i32, i32) {
    %c0_i32 = arith.constant 0 : i32
    %c0_i32_0 = arith.constant 0 : i32
    %c0_i32_1 = arith.constant 0 : i32
    return %c0_i32, %arg0, %c0_i32_0 : i32, i32, i32
  }
  func.func @transform_1(%arg0: i32) -> (i32, i32) {
    %c0_i32 = arith.constant 0 : i32
    %c0_i32_0 = arith.constant 0 : i32
    return %arg0, %c0_i32 : i32, i32
  }
}

</mosaic_0001>

<llo_original>
// kernel: norm_pooling_2d.1
$region0: #{norm_pooling_2d.1}
  #allocation0 [shape = 'u32[]', space=smem, size = 0x4, offset = 0x4, fixed_abs, tag = 'smem constant byte address 0x4 - core index']
  #allocation1 [shape = 'u32[144,128]{1,0:T(1,128)}', space=vmem, size = 0x12000, scoped, tag = 'internal scratch']
  %s0 = inlined_call_operand.vmem [shape: f32[4,128,4], index: 0, kind: input, shape index: {}]
  %s1 = inlined_call_operand.vmem [shape: f32[128,4], index: 1, kind: output, shape index: {}]
  %s2 = sld [smem:[#allocation0]]
  $region14: #{norm_pooling_2d.1} parent=0
    _
  %s4 = ssub.s32 1, %s2
  %s5 = scalar_select 0, %s4, %s2
  // Predicated region
  $region2: #{norm_pooling_2d.1} parent=0 // pred_check
    _
  $region3: #{norm_pooling_2d.1} parent=0 // pred_check_branch
    %7 = sbr.rel (0) target = $region5
  $region4: #{norm_pooling_2d.1} parent=0 // pred_region
    _
  $region5: #{norm_pooling_2d.1} parent=0 // pred_fallthru
    _
  %v8 = vld [vmem:[%s0] sm:$0xff]
  %v9 = vld [vmem:[%s0 + $0x8] sm:$0xff]
  %v10 = vld [vmem:[%s0 + $0x10] sm:$0xff]
  %v11 = vld [vmem:[%s0 + $0x18] sm:$0xff]
  %v12 = vld [vmem:[%s0 + $0x20] sm:$0xff]
  %v13 = vld [vmem:[%s0 + $0x28] sm:$0xff]
  %v14 = vld [vmem:[%s0 + $0x30] sm:$0xff]
  %v15 = vld [vmem:[%s0 + $0x38] sm:$0xff]
  %v16 = vld [vmem:[%s0 + $0x40] sm:$0xff]
  %v17 = vld [vmem:[%s0 + $0x48] sm:$0xff]
  %v18 = vld [vmem:[%s0 + $0x50] sm:$0xff]
  %v19 = vld [vmem:[%s0 + $0x58] sm:$0xff]
  %v20 = vld [vmem:[%s0 + $0x60] sm:$0xff]
  %v21 = vld [vmem:[%s0 + $0x68] sm:$0xff]
  %v22 = vld [vmem:[%s0 + $0x70] sm:$0xff]
  %v23 = vld [vmem:[%s0 + $0x78] sm:$0xff]
  %v24 = vmul.f32 %v8, %v8
  %v25 = vmul.f32 %v9, %v9
  %v26 = vmul.f32 %v10, %v10
  %v27 = vmul.f32 %v11, %v11
  %v28 = vmul.f32 %v12, %v12
  %v29 = vmul.f32 %v13, %v13
  %v30 = vmul.f32 %v14, %v14
  %v31 = vmul.f32 %v15, %v15
  %v32 = vmul.f32 %v16, %v16
  %v33 = vmul.f32 %v17, %v17
  %v34 = vmul.f32 %v18, %v18
  %v35 = vmul.f32 %v19, %v19
  %v36 = vmul.f32 %v20, %v20
  %v37 = vmul.f32 %v21, %v21
  %v38 = vmul.f32 %v22, %v22
  %v39 = vmul.f32 %v23, %v23
  %v40 = vadd.f32 %v24, 0.0
  %v41 = vadd.f32 %v25, 0.0
  %v42 = vadd.f32 %v26, 0.0
  %v43 = vadd.f32 %v27, 0.0
  %v44 = vadd.f32 %v28, 0.0
  %v45 = vadd.f32 %v29, 0.0
  %v46 = vadd.f32 %v30, 0.0
  %v47 = vadd.f32 %v31, 0.0
  %v48 = vadd.f32 %v32, 0.0
  %v49 = vadd.f32 %v33, 0.0
  %v50 = vadd.f32 %v34, 0.0
  %v51 = vadd.f32 %v35, 0.0
  %v52 = vadd.f32 %v36, 0.0
  %v53 = vadd.f32 %v37, 0.0
  %v54 = vadd.f32 %v38, 0.0
  %v55 = vadd.f32 %v39, 0.0
  %s56 = scalar_lea.vmem %s0, 128
  %v57 = vld [vmem:[%s56] sm:$0xff]
  %v58 = vld [vmem:[%s56 + $0x8] sm:$0xff]
  %v59 = vld [vmem:[%s56 + $0x10] sm:$0xff]
  %v60 = vld [vmem:[%s56 + $0x18] sm:$0xff]
  %v61 = vld [vmem:[%s56 + $0x20] sm:$0xff]
  %v62 = vld [vmem:[%s56 + $0x28] sm:$0xff]
  %v63 = vld [vmem:[%s56 + $0x30] sm:$0xff]
  %v64 = vld [vmem:[%s56 + $0x38] sm:$0xff]
  %v65 = vld [vmem:[%s56 + $0x40] sm:$0xff]
  %v66 = vld [vmem:[%s56 + $0x48] sm:$0xff]
  %v67 = vld [vmem:[%s56 + $0x50] sm:$0xff]
  %v68 = vld [vmem:[%s56 + $0x58] sm:$0xff]
  %v69 = vld [vmem:[%s56 + $0x60] sm:$0xff]
  %v70 = vld [vmem:[%s56 + $0x68] sm:$0xff]
  %v71 = vld [vmem:[%s56 + $0x70] sm:$0xff]
  %v72 = vld [vmem:[%s56 + $0x78] sm:$0xff]
  %v73 = vmul.f32 %v57, %v57
  %v74 = vmul.f32 %v58, %v58
  %v75 = vmul.f32 %v59, %v59
  %v76 = vmul.f32 %v60, %v60
  %v77 = vmul.f32 %v61, %v61
  %v78 = vmul.f32 %v62, %v62
  %v79 = vmul.f32 %v63, %v63
  %v80 = vmul.f32 %v64, %v64
  %v81 = vmul.f32 %v65, %v65
  %v82 = vmul.f32 %v66, %v66
  %v83 = vmul.f32 %v67, %v67
  %v84 = vmul.f32 %v68, %v68
  %v85 = vmul.f32 %v69, %v69
  %v86 = vmul.f32 %v70, %v70
  %v87 = vmul.f32 %v71, %v71
  %v88 = vmul.f32 %v72, %v72
  %v89 = vadd.f32 %v40, %v73
  %v90 = vadd.f32 %v41, %v74
  %v91 = vadd.f32 %v42, %v75
  %v92 = vadd.f32 %v43, %v76
  %v93 = vadd.f32 %v44, %v77
  %v94 = vadd.f32 %v45, %v78
  %v95 = vadd.f32 %v46, %v79
  %v96 = vadd.f32 %v47, %v80
  %v97 = vadd.f32 %v48, %v81
  %v98 = vadd.f32 %v49, %v82
  %v99 = vadd.f32 %v50, %v83
  %v100 = vadd.f32 %v51, %v84
  %v101 = vadd.f32 %v52, %v85
  %v102 = vadd.f32 %v53, %v86
  %v103 = vadd.f32 %v54, %v87
  %v104 = vadd.f32 %v55, %v88
  %s105 = scalar_lea.vmem %s0, 256
  %v106 = vld [vmem:[%s105] sm:$0xff]
  %v107 = vld [vmem:[%s105 + $0x8] sm:$0xff]
  %v108 = vld [vmem:[%s105 + $0x10] sm:$0xff]
  %v109 = vld [vmem:[%s105 + $0x18] sm:$0xff]
  %v110 = vld [vmem:[%s105 + $0x20] sm:$0xff]
  %v111 = vld [vmem:[%s105 + $0x28] sm:$0xff]
  %v112 = vld [vmem:[%s105 + $0x30] sm:$0xff]
  %v113 = vld [vmem:[%s105 + $0x38] sm:$0xff]
  %v114 = vld [vmem:[%s105 + $0x40] sm:$0xff]
  %v115 = vld [vmem:[%s105 + $0x48] sm:$0xff]
  %v116 = vld [vmem:[%s105 + $0x50] sm:$0xff]
  %v117 = vld [vmem:[%s105 + $0x58] sm:$0xff]
  %v118 = vld [vmem:[%s105 + $0x60] sm:$0xff]
  %v119 = vld [vmem:[%s105 + $0x68] sm:$0xff]
  %v120 = vld [vmem:[%s105 + $0x70] sm:$0xff]
  %v121 = vld [vmem:[%s105 + $0x78] sm:$0xff]
  %v122 = vmul.f32 %v106, %v106
  %v123 = vmul.f32 %v107, %v107
  %v124 = vmul.f32 %v108, %v108
  %v125 = vmul.f32 %v109, %v109
  %v126 = vmul.f32 %v110, %v110
  %v127 = vmul.f32 %v111, %v111
  %v128 = vmul.f32 %v112, %v112
  %v129 = vmul.f32 %v113, %v113
  %v130 = vmul.f32 %v114, %v114
  %v131 = vmul.f32 %v115, %v115
  %v132 = vmul.f32 %v116, %v116
  %v133 = vmul.f32 %v117, %v117
  %v134 = vmul.f32 %v118, %v118
  %v135 = vmul.f32 %v119, %v119
  %v136 = vmul.f32 %v120, %v120
  %v137 = vmul.f32 %v121, %v121
  %v138 = vadd.f32 %v89, %v122
  %v139 = vadd.f32 %v90, %v123
  %v140 = vadd.f32 %v91, %v124
  %v141 = vadd.f32 %v92, %v125
  %v142 = vadd.f32 %v93, %v126
  %v143 = vadd.f32 %v94, %v127
  %v144 = vadd.f32 %v95, %v128
  %v145 = vadd.f32 %v96, %v129
  %v146 = vadd.f32 %v97, %v130
  %v147 = vadd.f32 %v98, %v131
  %v148 = vadd.f32 %v99, %v132
  %v149 = vadd.f32 %v100, %v133
  %v150 = vadd.f32 %v101, %v134
  %v151 = vadd.f32 %v102, %v135
  %v152 = vadd.f32 %v103, %v136
  %v153 = vadd.f32 %v104, %v137
  %s154 = scalar_lea.vmem %s0, 384
  %v155 = vld [vmem:[%s154] sm:$0xff]
  %v156 = vld [vmem:[%s154 + $0x8] sm:$0xff]
  %v157 = vld [vmem:[%s154 + $0x10] sm:$0xff]
  %v158 = vld [vmem:[%s154 + $0x18] sm:$0xff]
  %v159 = vld [vmem:[%s154 + $0x20] sm:$0xff]
  %v160 = vld [vmem:[%s154 + $0x28] sm:$0xff]
  %v161 = vld [vmem:[%s154 + $0x30] sm:$0xff]
  %v162 = vld [vmem:[%s154 + $0x38] sm:$0xff]
  %v163 = vld [vmem:[%s154 + $0x40] sm:$0xff]
  %v164 = vld [vmem:[%s154 + $0x48] sm:$0xff]
  %v165 = vld [vmem:[%s154 + $0x50] sm:$0xff]
  %v166 = vld [vmem:[%s154 + $0x58] sm:$0xff]
  %v167 = vld [vmem:[%s154 + $0x60] sm:$0xff]
  %v168 = vld [vmem:[%s154 + $0x68] sm:$0xff]
  %v169 = vld [vmem:[%s154 + $0x70] sm:$0xff]
  %v170 = vld [vmem:[%s154 + $0x78] sm:$0xff]
  %v171 = vmul.f32 %v155, %v155
  %v172 = vmul.f32 %v156, %v156
  %v173 = vmul.f32 %v157, %v157
  %v174 = vmul.f32 %v158, %v158
  %v175 = vmul.f32 %v159, %v159
  %v176 = vmul.f32 %v160, %v160
  %v177 = vmul.f32 %v161, %v161
  %v178 = vmul.f32 %v162, %v162
  %v179 = vmul.f32 %v163, %v163
  %v180 = vmul.f32 %v164, %v164
  %v181 = vmul.f32 %v165, %v165
  %v182 = vmul.f32 %v166, %v166
  %v183 = vmul.f32 %v167, %v167
  %v184 = vmul.f32 %v168, %v168
  %v185 = vmul.f32 %v169, %v169
  %v186 = vmul.f32 %v170, %v170
  %v187 = vadd.f32 %v138, %v171
  %v188 = vadd.f32 %v139, %v172
  %v189 = vadd.f32 %v140, %v173
  %v190 = vadd.f32 %v141, %v174
  %v191 = vadd.f32 %v142, %v175
  %v192 = vadd.f32 %v143, %v176
  %v193 = vadd.f32 %v144, %v177
  %v194 = vadd.f32 %v145, %v178
  %v195 = vadd.f32 %v146, %v179
  %v196 = vadd.f32 %v147, %v180
  %v197 = vadd.f32 %v148, %v181
  %v198 = vadd.f32 %v149, %v182
  %v199 = vadd.f32 %v150, %v183
  %v200 = vadd.f32 %v151, %v184
  %v201 = vadd.f32 %v152, %v185
  %v202 = vadd.f32 %v153, %v186
  %v203 = vrsqrt.pop %v187
  %v204 = vmul.f32 %v187, %v203
  %vm205 = vcmp.eq.f32.partialorder %v187, inf
  %v206 = vsel %vm205, %v187, %v204
  %vm207 = vcmp.eq.f32.partialorder %v187, 0.0
  %v208 = vand.u32 %v187, 2147483648
  %v209 = vsel %vm207, %v208, %v206
  %v210 = vrsqrt.pop %v188
  %v211 = vmul.f32 %v188, %v210
  %vm212 = vcmp.eq.f32.partialorder %v188, inf
  %v213 = vsel %vm212, %v188, %v211
  %vm214 = vcmp.eq.f32.partialorder %v188, 0.0
  %v215 = vand.u32 %v188, 2147483648
  %v216 = vsel %vm214, %v215, %v213
  %v217 = vrsqrt.pop %v189
  %v218 = vmul.f32 %v189, %v217
  %vm219 = vcmp.eq.f32.partialorder %v189, inf
  %v220 = vsel %vm219, %v189, %v218
  %vm221 = vcmp.eq.f32.partialorder %v189, 0.0
  %v222 = vand.u32 %v189, 2147483648
  %v223 = vsel %vm221, %v222, %v220
  %v224 = vrsqrt.pop %v190
  %v225 = vmul.f32 %v190, %v224
  %vm226 = vcmp.eq.f32.partialorder %v190, inf
  %v227 = vsel %vm226, %v190, %v225
  %vm228 = vcmp.eq.f32.partialorder %v190, 0.0
  %v229 = vand.u32 %v190, 2147483648
  %v230 = vsel %vm228, %v229, %v227
  %v231 = vrsqrt.pop %v191
  %v232 = vmul.f32 %v191, %v231
  %vm233 = vcmp.eq.f32.partialorder %v191, inf
  %v234 = vsel %vm233, %v191, %v232
  %vm235 = vcmp.eq.f32.partialorder %v191, 0.0
  %v236 = vand.u32 %v191, 2147483648
  %v237 = vsel %vm235, %v236, %v234
  %v238 = vrsqrt.pop %v192
  %v239 = vmul.f32 %v192, %v238
  %vm240 = vcmp.eq.f32.partialorder %v192, inf
  %v241 = vsel %vm240, %v192, %v239
  %vm242 = vcmp.eq.f32.partialorder %v192, 0.0
  %v243 = vand.u32 %v192, 2147483648
  %v244 = vsel %vm242, %v243, %v241
  %v245 = vrsqrt.pop %v193
  %v246 = vmul.f32 %v193, %v245
  %vm247 = vcmp.eq.f32.partialorder %v193, inf
  %v248 = vsel %vm247, %v193, %v246
  %vm249 = vcmp.eq.f32.partialorder %v193, 0.0
  %v250 = vand.u32 %v193, 2147483648
  %v251 = vsel %vm249, %v250, %v248
  %v252 = vrsqrt.pop %v194
  %v253 = vmul.f32 %v194, %v252
  %vm254 = vcmp.eq.f32.partialorder %v194, inf
  %v255 = vsel %vm254, %v194, %v253
  %vm256 = vcmp.eq.f32.partialorder %v194, 0.0
  %v257 = vand.u32 %v194, 2147483648
  %v258 = vsel %vm256, %v257, %v255
  %v259 = vrsqrt.pop %v195
  %v260 = vmul.f32 %v195, %v259
  %vm261 = vcmp.eq.f32.partialorder %v195, inf
  %v262 = vsel %vm261, %v195, %v260
  %vm263 = vcmp.eq.f32.partialorder %v195, 0.0
  %v264 = vand.u32 %v195, 2147483648
  %v265 = vsel %vm263, %v264, %v262
  %v266 = vrsqrt.pop %v196
  %v267 = vmul.f32 %v196, %v266
  %vm268 = vcmp.eq.f32.partialorder %v196, inf
  %v269 = vsel %vm268, %v196, %v267
  %vm270 = vcmp.eq.f32.partialorder %v196, 0.0
  %v271 = vand.u32 %v196, 2147483648
  %v272 = vsel %vm270, %v271, %v269
  %v273 = vrsqrt.pop %v197
  %v274 = vmul.f32 %v197, %v273
  %vm275 = vcmp.eq.f32.partialorder %v197, inf
  %v276 = vsel %vm275, %v197, %v274
  %vm277 = vcmp.eq.f32.partialorder %v197, 0.0
  %v278 = vand.u32 %v197, 2147483648
  %v279 = vsel %vm277, %v278, %v276
  %v280 = vrsqrt.pop %v198
  %v281 = vmul.f32 %v198, %v280
  %vm282 = vcmp.eq.f32.partialorder %v198, inf
  %v283 = vsel %vm282, %v198, %v281
  %vm284 = vcmp.eq.f32.partialorder %v198, 0.0
  %v285 = vand.u32 %v198, 2147483648
  %v286 = vsel %vm284, %v285, %v283
  %v287 = vrsqrt.pop %v199
  %v288 = vmul.f32 %v199, %v287
  %vm289 = vcmp.eq.f32.partialorder %v199, inf
  %v290 = vsel %vm289, %v199, %v288
  %vm291 = vcmp.eq.f32.partialorder %v199, 0.0
  %v292 = vand.u32 %v199, 2147483648
  %v293 = vsel %vm291, %v292, %v290
  %v294 = vrsqrt.pop %v200
  %v295 = vmul.f32 %v200, %v294
  %vm296 = vcmp.eq.f32.partialorder %v200, inf
  %v297 = vsel %vm296, %v200, %v295
  %vm298 = vcmp.eq.f32.partialorder %v200, 0.0
  %v299 = vand.u32 %v200, 2147483648
  %v300 = vsel %vm298, %v299, %v297
  %v301 = vrsqrt.pop %v201
  %v302 = vmul.f32 %v201, %v301
  %vm303 = vcmp.eq.f32.partialorder %v201, inf
  %v304 = vsel %vm303, %v201, %v302
  %vm305 = vcmp.eq.f32.partialorder %v201, 0.0
  %v306 = vand.u32 %v201, 2147483648
  %v307 = vsel %vm305, %v306, %v304
  %v308 = vrsqrt.pop %v202
  %v309 = vmul.f32 %v202, %v308
  %vm310 = vcmp.eq.f32.partialorder %v202, inf
  %v311 = vsel %vm310, %v202, %v309
  %vm312 = vcmp.eq.f32.partialorder %v202, 0.0
  %v313 = vand.u32 %v202, 2147483648
  %v314 = vsel %vm312, %v313, %v311
  %vm315 = vcmask 31744
  %316 = vst.msk [vmem:[%s1] sm:$0xff] %vm315, %v209
  %317 = vst.msk [vmem:[%s1 + $0x8] sm:$0xff] %vm315, %v216
  %318 = vst.msk [vmem:[%s1 + $0x10] sm:$0xff] %vm315, %v223
  %319 = vst.msk [vmem:[%s1 + $0x18] sm:$0xff] %vm315, %v230
  %320 = vst.msk [vmem:[%s1 + $0x20] sm:$0xff] %vm315, %v237
  %321 = vst.msk [vmem:[%s1 + $0x28] sm:$0xff] %vm315, %v244
  %322 = vst.msk [vmem:[%s1 + $0x30] sm:$0xff] %vm315, %v251
  %323 = vst.msk [vmem:[%s1 + $0x38] sm:$0xff] %vm315, %v258
  %324 = vst.msk [vmem:[%s1 + $0x40] sm:$0xff] %vm315, %v265
  %325 = vst.msk [vmem:[%s1 + $0x48] sm:$0xff] %vm315, %v272
  %326 = vst.msk [vmem:[%s1 + $0x50] sm:$0xff] %vm315, %v279
  %327 = vst.msk [vmem:[%s1 + $0x58] sm:$0xff] %vm315, %v286
  %328 = vst.msk [vmem:[%s1 + $0x60] sm:$0xff] %vm315, %v293
  %329 = vst.msk [vmem:[%s1 + $0x68] sm:$0xff] %vm315, %v300
  %330 = vst.msk [vmem:[%s1 + $0x70] sm:$0xff] %vm315, %v307
  %331 = vst.msk [vmem:[%s1 + $0x78] sm:$0xff] %vm315, %v314
  // Predicated region
  $region6: #{norm_pooling_2d.1} parent=0 // pred_check
    _
  $region7: #{norm_pooling_2d.1} parent=0 // pred_check_branch
    %333 = sbr.rel (0) target = $region9
  $region8: #{norm_pooling_2d.1} parent=0 // pred_region
    _
  $region9: #{norm_pooling_2d.1} parent=0 // pred_fallthru
    _
  // Predicated region
  $region10: #{norm_pooling_2d.1} parent=0 // pred_check
    _
  $region11: #{norm_pooling_2d.1} parent=0 // pred_check_branch
    %335 = sbr.rel (0) target = $region13
  $region12: #{norm_pooling_2d.1} parent=0 // pred_region
    _
  $region13: #{norm_pooling_2d.1} parent=0 // pred_fallthru
    _

</llo_original>
